<compile_context>
chip_gen: v6e
topology: v6e:2x2x1
jax: 0.10.0
libtpu: 0.0.40
codegen_flags: <defaults>
</compile_context>

<pallas_src>
import functools

import jax
import jax.numpy as jnp
from jax import lax
from jax.experimental import pallas as pl
from jax.experimental.pallas import tpu as pltpu

NUM_FEATURES = 64                     # 'cifar' backbone feature length
NUM_CLASSES = 10                      # small synthetic classifier head
NC_PAD = 128                          # lane-dense classifier width (zero padded)
CHUNK_TARGET = 512                    # pixels per vreg-resident FMA sub-chunk
VMEM_BLOCK_BUDGET = 16 * 1024 * 1024  # per input block (2 bufs stay < v7x 64MiB)


def _fused_net_kernel(x_ref, w_bb_ref, b_bb_ref, w_cls_ref, b_cls_ref,
                      o_ref, acc_ref, *, cin, nf, bb, chunk, n_chunks, inv_hw):
    """backbone(1x1 conv + ReLU) -> GAP -> FC, fused over (batch, spatial) grid.

    Layouts:
      x_ref     : (bb, cin, T)   NCHW streamed directly, HW on the lane axis
      w_bb_ref  : (nf, cin)      conv weight (torch Conv2d orientation)
      b_bb_ref  : (nf, 1)
      w_cls_ref : (nf, NC_PAD)   FC weight transposed + zero padded (lane-dense)
      b_cls_ref : (1, NC_PAD)
      o_ref     : (1, bb, NC_PAD)
      acc_ref   : (nf, bb) f32   running spatial sum; features never hit HBM
    """
    si = pl.program_id(1)

    @pl.when(si == 0)
    def _init():
        acc_ref[...] = jnp.zeros_like(acc_ref)

    # Grid-invariant operands, hoisted out of the pixel loops.
    w = w_bb_ref[...]                                  # (nf, cin)
    w_cols = [w[:, c:c + 1] for c in range(cin)]       # cin x (nf, 1)
    bvec = b_bb_ref[...]                               # (nf, 1)

    def conv_relu_sum(be, off):
        """1x1 conv + ReLU on a (cin, chunk) pixel slab, summed over pixels."""
        y = None
        for c in range(cin):                           # K = cin: tiny VPU FMA, not MXU
            xc = x_ref[be, c:c + 1, pl.ds(off, chunk)]  # (1, chunk) lane-dense load
            t = w_cols[c] * xc                          # (nf, chunk)
            y = t if y is None else y + t
        y = jnp.maximum(y + bvec, 0.0)                  # ReLU
        return jnp.sum(y, axis=-1, keepdims=True)       # (nf, 1) lane (XLU) reduce

    cols = []
    for be in range(bb):                               # static: images per block
        if n_chunks == 1:
            part = conv_relu_sum(be, 0)
        else:
            def body(k, part, be=be):
                off = k * chunk
                if chunk % 128 == 0:
                    off = pl.multiple_of(off, 128)
                return part + conv_relu_sum(be, off)
            part = lax.fori_loop(0, n_chunks, body,
                                 jnp.zeros((nf, 1), jnp.float32), unroll=True)
        cols.append(part)
    acc_ref[...] += cols[0] if bb == 1 else jnp.concatenate(cols, axis=1)

    # FC classifier epilogue, once per batch block (after the last spatial tile).
    @pl.when(si == pl.num_programs(1) - 1)
    def _finalize():
        feat = acc_ref[...] * inv_hw                   # GAP mean, (nf, bb)
        w_cls = w_cls_ref[...]                         # (nf, NC_PAD)
        rows = []
        for be in range(bb):
            f_be = feat[:, be:be + 1]                  # (nf, 1)
            # Tiny contraction (nf x NC_PAD) done on the VPU/XLU: negligible cost,
            # avoids any transpose/relayout of the sublane-oriented accumulator.
            rows.append(jnp.sum(f_be * w_cls, axis=0, keepdims=True))  # (1, NC_PAD)
        logits = (rows[0] if bb == 1 else jnp.concatenate(rows, axis=0))
        o_ref[0] = logits + b_cls_ref[...]             # lane-dense 128-wide store


def _pick_hw_tile(hw, cin, bb):
    """Largest spatial tile (whole image if possible) fitting the block budget."""
    if bb * cin * hw * 4 <= VMEM_BLOCK_BUDGET:
        return hw
    t = (VMEM_BLOCK_BUDGET // (bb * cin * 4)) // 128 * 128
    while t >= 128 and hw % t != 0:
        t -= 128
    assert t >= 128 and hw % t == 0, "could not find a lane-aligned HW tile"
    return t


def _pick_chunk(t):
    """In-kernel sub-chunk that divides the spatial tile (vreg residency)."""
    if t <= CHUNK_TARGET:
        return t
    for c in range(CHUNK_TARGET, 127, -128):
        if t % c == 0:
            return c
    return t


def network_forward(x_nchw, params, *, batch_block=None):
    """Equivalent of Network.forward(x) on the default (no-kwargs) path."""
    b, cin, h, w = x_nchw.shape
    hw = h * w
    nf = params["w_bb"].shape[0]

    # Pack several images per block once the batch is large, but always keep
    # >= 2 blocks on the (parallel) batch axis so both v7x TensorCores get work.
    if batch_block is None:
        batch_block = 8 if (b % 8 == 0 and b >= 16) else 1
    assert b % batch_block == 0
    nb = b // batch_block

    hw_tile = _pick_hw_tile(hw, cin, batch_block)
    ns = hw // hw_tile
    chunk = _pick_chunk(hw_tile)
    assert hw_tile % chunk == 0
    n_chunks = hw_tile // chunk

    # Stream straight from the NCHW layout (free contiguous reshape, no transpose
    # pass, no recast): HW is the 128-lane dimension of every DMA tile.
    x_rows = x_nchw.reshape(b, cin, hw)

    kernel = functools.partial(
        _fused_net_kernel, cin=cin, nf=nf, bb=batch_block,
        chunk=chunk, n_chunks=n_chunks, inv_hw=1.0 / hw)

    x_block_bytes = batch_block * cin * hw_tile * x_rows.dtype.itemsize
    # Scale the scoped-VMEM budget with the block (don't hard-cap at 32 MiB on
    # v5e/v6e); the 16 MiB block budget keeps 2x buffers well inside v7x VMEM.
    vmem_limit = int(min(100 * 2**20, max(32 * 2**20, 2 * x_block_bytes + (4 << 20))))

    logits_pad = pl.pallas_call(
        kernel,
        out_shape=jax.ShapeDtypeStruct((nb, batch_block, NC_PAD), jnp.float32),
        grid_spec=pltpu.PrefetchScalarGridSpec(
            num_scalar_prefetch=0,
            grid=(nb, ns),                              # (batch blocks, spatial tiles)
            in_specs=[
                pl.BlockSpec((batch_block, cin, hw_tile), lambda bi, si: (bi, 0, si)),
                # NOTE: weights are grid-invariant (constant block index), so the
                # runtime skips their re-DMA; pl.Buffered(1) would also drop the
                # second (tiny) buffer but is omitted for version compatibility.
                pl.BlockSpec((nf, cin), lambda bi, si: (0, 0)),
                pl.BlockSpec((nf, 1), lambda bi, si: (0, 0)),
                pl.BlockSpec((nf, NC_PAD), lambda bi, si: (0, 0)),
                pl.BlockSpec((1, NC_PAD), lambda bi, si: (0, 0)),
            ],
            out_specs=pl.BlockSpec((1, batch_block, NC_PAD),
                                   lambda bi, si: (bi, 0, 0)),
            scratch_shapes=[pltpu.VMEM((nf, batch_block), jnp.float32)],
        ),
        compiler_params=pltpu.CompilerParams(
            dimension_semantics=("parallel", "arbitrary"),
            vmem_limit_bytes=vmem_limit,
        ),
    )(x_rows, params["w_bb"], params["b_bb"], params["w_cls"], params["b_cls"])

    return logits_pad.reshape(b, NC_PAD)[:, :NUM_CLASSES]   # slice away zero pad


def init_params(key, cin=4):
    k1, k2, k3, k4 = jax.random.split(key, 4)
    # Stand-in backbone: 1x1 conv weight in torch Conv2d orientation (F, Cin).
    w_bb = jax.random.normal(k1, (NUM_FEATURES, cin), jnp.float32) / jnp.sqrt(cin)
    b_bb = jax.random.normal(k2, (NUM_FEATURES,), jnp.float32) * 0.01
    # nn.Linear(num_features, num_classes, bias=True): weight (NC, F).
    w_cls = (jax.random.normal(k3, (NUM_CLASSES, NUM_FEATURES), jnp.float32)
             / jnp.sqrt(NUM_FEATURES))
    b_cls = jax.random.normal(k4, (NUM_CLASSES,), jnp.float32) * 0.01

    kernel_params = {
        "w_bb": w_bb,                                     # (F, cin)
        "b_bb": b_bb.reshape(NUM_FEATURES, 1),            # (F, 1)
        "w_cls": jnp.zeros((NUM_FEATURES, NC_PAD), jnp.float32)
                    .at[:, :NUM_CLASSES].set(w_cls.T),    # (F, NC_PAD), zero pad
        "b_cls": jnp.zeros((1, NC_PAD), jnp.float32)
                    .at[:, :NUM_CLASSES].set(b_cls),      # (1, NC_PAD), zero pad
    }
    raw = {"w_bb": w_bb, "b_bb": b_bb, "w_cls": w_cls, "b_cls": b_cls}
    return kernel_params, raw


if __name__ == "__main__":
    key = jax.random.PRNGKey(0)
    kx, kp = jax.random.split(key)
    B, CIN, H, W = 2, 4, 16, 16
    x = jax.random.normal(kx, (B, CIN, H, W), jnp.float32)    # NCHW, like PyTorch
    params, raw = init_params(kp, cin=CIN)

    logits = network_forward(x, params)
    jax.block_until_ready(logits)

    # Plain-JAX reference of the same forward math (all f32, no input recast).
    xr = x.reshape(B, CIN, H * W)
    fmap = jnp.maximum(
        jnp.einsum('fc,bct->bft', raw["w_bb"], xr) + raw["b_bb"][None, :, None], 0.0)
    feat = fmap.mean(axis=-1)                           # GAP  (B, F)
    ref = feat @ raw["w_cls"].T + raw["b_cls"]          # FC   (B, NC)

    assert logits.shape == (B, NUM_CLASSES)
    assert jnp.allclose(logits, ref, atol=1e-2, rtol=1e-2), "Pallas result mismatch"

    print("KERNEL_OK")
</pallas_src>

<mosaic_0001>
module attributes {stable_mosaic.version = 11 : i64} {
  func.func @_fused_net_kernel(%arg0: i32, %arg1: i32, %arg2: memref<1x4x256xf32, #tpu.memory_space<vmem>>, %arg3: memref<64x4xf32, #tpu.memory_space<vmem>>, %arg4: memref<64x1xf32, #tpu.memory_space<vmem>>, %arg5: memref<64x128xf32, #tpu.memory_space<vmem>>, %arg6: memref<1x128xf32, #tpu.memory_space<vmem>>, %arg7: memref<1x1x128xf32, #tpu.memory_space<vmem>>, %arg8: memref<64x1xf32, #tpu.memory_space<vmem>>) attributes {dimension_semantics = [#tpu.dimension_semantics<parallel>, #tpu.dimension_semantics<arbitrary>], iteration_bounds = array<i64: 2, 1>, scalar_prefetch = 0 : i64, scratch_operands = 1 : i64, tpu.core_type = #tpu.core_type<tc>, window_params = [{transform_indices = @transform_0, window_bounds = array<i64: 1, 4, 256>}, {pipeline_mode = #tpu.pipeline_mode<synchronous>, transform_indices = @transform_1, window_bounds = array<i64: 64, 4>}, {pipeline_mode = #tpu.pipeline_mode<synchronous>, transform_indices = @transform_2, window_bounds = array<i64: 64, 1>}, {pipeline_mode = #tpu.pipeline_mode<synchronous>, transform_indices = @transform_3, window_bounds = array<i64: 64, 128>}, {pipeline_mode = #tpu.pipeline_mode<synchronous>, transform_indices = @transform_4, window_bounds = array<i64: 1, 128>}, {transform_indices = @transform_5, window_bounds = array<i64: 1, 1, 128>}]} {
    %c0_i32 = arith.constant 0 : i32
    %0 = arith.cmpi eq, %arg1, %c0_i32 : i32
    %1 = arith.extui %0 : i1 to i32
    %c0_i32_0 = arith.constant 0 : i32
    %2 = arith.cmpi ne, %1, %c0_i32_0 : i32
    scf.if %2 {
      %cst_20 = arith.constant 0.000000e+00 : f32
      %44 = vector.broadcast %cst_20 : f32 to vector<64x1xf32>
      %c0_21 = arith.constant 0 : index
      %c0_22 = arith.constant 0 : index
      %45 = vector.load %arg8[%c0_21, %c0_22] : memref<64x1xf32, #tpu.memory_space<vmem>>, vector<64x1xf32>
      tpu.vector_store %arg8[%c0_21, %c0_22], %44 {strides = array<i32>} : memref<64x1xf32, #tpu.memory_space<vmem>>, vector<64x1xf32>,
    } else {
    }
    %c0 = arith.constant 0 : index
    %c0_1 = arith.constant 0 : index
    %3 = vector.load %arg3[%c0, %c0_1] : memref<64x4xf32, #tpu.memory_space<vmem>>, vector<64x4xf32>
    %4 = vector.extract_strided_slice %3 {offsets = [0, 0], sizes = [64, 1], strides = [1, 1]} : vector<64x4xf32> to vector<64x1xf32>
    %5 = vector.extract_strided_slice %3 {offsets = [0, 1], sizes = [64, 1], strides = [1, 1]} : vector<64x4xf32> to vector<64x1xf32>
    %6 = vector.extract_strided_slice %3 {offsets = [0, 2], sizes = [64, 1], strides = [1, 1]} : vector<64x4xf32> to vector<64x1xf32>
    %7 = vector.extract_strided_slice %3 {offsets = [0, 3], sizes = [64, 1], strides = [1, 1]} : vector<64x4xf32> to vector<64x1xf32>
    %c0_2 = arith.constant 0 : index
    %c0_3 = arith.constant 0 : index
    %8 = vector.load %arg4[%c0_2, %c0_3] : memref<64x1xf32, #tpu.memory_space<vmem>>, vector<64x1xf32>
    %c0_4 = arith.constant 0 : index
    %c0_5 = arith.constant 0 : index
    %c0_6 = arith.constant 0 : index
    %9 = vector.load %arg2[%c0_4, %c0_5, %c0_6] : memref<1x4x256xf32, #tpu.memory_space<vmem>>, vector<1x1x256xf32>
    %10 = vector.shape_cast %9 : vector<1x1x256xf32> to vector<1x256xf32>
    %11 = vector.broadcast %4 : vector<64x1xf32> to vector<64x256xf32>
    %12 = vector.broadcast %10 : vector<1x256xf32> to vector<64x256xf32>
    %13 = arith.mulf %11, %12 : vector<64x256xf32>
    %c0_7 = arith.constant 0 : index
    %c1 = arith.constant 1 : index
    %c0_8 = arith.constant 0 : index
    %14 = vector.load %arg2[%c0_7, %c1, %c0_8] : memref<1x4x256xf32, #tpu.memory_space<vmem>>, vector<1x1x256xf32>
    %15 = vector.shape_cast %14 : vector<1x1x256xf32> to vector<1x256xf32>
    %16 = vector.broadcast %5 : vector<64x1xf32> to vector<64x256xf32>
    %17 = vector.broadcast %15 : vector<1x256xf32> to vector<64x256xf32>
    %18 = arith.mulf %16, %17 : vector<64x256xf32>
    %19 = arith.addf %13, %18 : vector<64x256xf32>
    %c0_9 = arith.constant 0 : index
    %c2 = arith.constant 2 : index
    %c0_10 = arith.constant 0 : index
    %20 = vector.load %arg2[%c0_9, %c2, %c0_10] : memref<1x4x256xf32, #tpu.memory_space<vmem>>, vector<1x1x256xf32>
    %21 = vector.shape_cast %20 : vector<1x1x256xf32> to vector<1x256xf32>
    %22 = vector.broadcast %6 : vector<64x1xf32> to vector<64x256xf32>
    %23 = vector.broadcast %21 : vector<1x256xf32> to vector<64x256xf32>
    %24 = arith.mulf %22, %23 : vector<64x256xf32>
    %25 = arith.addf %19, %24 : vector<64x256xf32>
    %c0_11 = arith.constant 0 : index
    %c3 = arith.constant 3 : index
    %c0_12 = arith.constant 0 : index
    %26 = vector.load %arg2[%c0_11, %c3, %c0_12] : memref<1x4x256xf32, #tpu.memory_space<vmem>>, vector<1x1x256xf32>
    %27 = vector.shape_cast %26 : vector<1x1x256xf32> to vector<1x256xf32>
    %28 = vector.broadcast %7 : vector<64x1xf32> to vector<64x256xf32>
    %29 = vector.broadcast %27 : vector<1x256xf32> to vector<64x256xf32>
    %30 = arith.mulf %28, %29 : vector<64x256xf32>
    %31 = arith.addf %25, %30 : vector<64x256xf32>
    %32 = vector.broadcast %8 : vector<64x1xf32> to vector<64x256xf32>
    %33 = arith.addf %31, %32 : vector<64x256xf32>
    %cst = arith.constant 0.000000e+00 : f32
    %34 = vector.broadcast %cst : f32 to vector<64x256xf32>
    %35 = arith.maximumf %33, %34 : vector<64x256xf32>
    %cst_13 = arith.constant dense<0.000000e+00> : vector<64xf32>
    %36 = vector.multi_reduction <add>, %35, %cst_13 [1] : vector<64x256xf32> to vector<64xf32>
    %37 = vector.shape_cast %36 : vector<64xf32> to vector<64x1xf32>
    %c0_14 = arith.constant 0 : index
    %c0_15 = arith.constant 0 : index
    %38 = vector.load %arg8[%c0_14, %c0_15] : memref<64x1xf32, #tpu.memory_space<vmem>>, vector<64x1xf32>
    %39 = arith.addf %38, %37 : vector<64x1xf32>
    %c0_16 = arith.constant 0 : index
    %c0_17 = arith.constant 0 : index
    %40 = vector.load %arg8[%c0_16, %c0_17] : memref<64x1xf32, #tpu.memory_space<vmem>>, vector<64x1xf32>
    tpu.vector_store %arg8[%c0_16, %c0_17], %39 {strides = array<i32>} : memref<64x1xf32, #tpu.memory_space<vmem>>, vector<64x1xf32>,
    %c0_i32_18 = arith.constant 0 : i32
    %41 = arith.cmpi eq, %arg1, %c0_i32_18 : i32
    %42 = arith.extui %41 : i1 to i32
    %c0_i32_19 = arith.constant 0 : i32
    %43 = arith.cmpi ne, %42, %c0_i32_19 : i32
    scf.if %43 {
      %c0_20 = arith.constant 0 : index
      %c0_21 = arith.constant 0 : index
      %44 = vector.load %arg8[%c0_20, %c0_21] : memref<64x1xf32, #tpu.memory_space<vmem>>, vector<64x1xf32>
      %cst_22 = arith.constant 3.906250e-03 : f32
      %45 = vector.broadcast %cst_22 : f32 to vector<64x1xf32>
      %46 = arith.mulf %44, %45 : vector<64x1xf32>
      %c0_23 = arith.constant 0 : index
      %c0_24 = arith.constant 0 : index
      %47 = vector.load %arg5[%c0_23, %c0_24] : memref<64x128xf32, #tpu.memory_space<vmem>>, vector<64x128xf32>
      %48 = vector.broadcast %46 : vector<64x1xf32> to vector<64x128xf32>
      %49 = arith.mulf %48, %47 : vector<64x128xf32>
      %cst_25 = arith.constant dense<0.000000e+00> : vector<128xf32>
      %50 = vector.multi_reduction <add>, %49, %cst_25 [0] : vector<64x128xf32> to vector<128xf32>
      %51 = vector.shape_cast %50 : vector<128xf32> to vector<1x128xf32>
      %c0_26 = arith.constant 0 : index
      %c0_27 = arith.constant 0 : index
      %52 = vector.load %arg6[%c0_26, %c0_27] : memref<1x128xf32, #tpu.memory_space<vmem>>, vector<1x128xf32>
      %53 = arith.addf %51, %52 : vector<1x128xf32>
      %c0_28 = arith.constant 0 : index
      %c0_29 = arith.constant 0 : index
      %c0_30 = arith.constant 0 : index
      %54 = vector.load %arg7[%c0_28, %c0_29, %c0_30] : memref<1x1x128xf32, #tpu.memory_space<vmem>>, vector<1x1x128xf32>
      %55 = vector.shape_cast %54 : vector<1x1x128xf32> to vector<1x128xf32>
      %56 = vector.shape_cast %53 : vector<1x128xf32> to vector<1x1x128xf32>
      tpu.vector_store %arg7[%c0_28, %c0_29, %c0_30], %56 {strides = array<i32>} : memref<1x1x128xf32, #tpu.memory_space<vmem>>, vector<1x1x128xf32>,
    } else {
    }
    return
  }
  func.func @transform_0(%arg0: i32, %arg1: i32) -> (i32, i32, i32) {
    %c0_i32 = arith.constant 0 : i32
    %c0_i32_0 = arith.constant 0 : i32
    return %arg0, %c0_i32, %arg1 : i32, i32, i32
  }
  func.func @transform_1(%arg0: i32, %arg1: i32) -> (i32, i32) {
    %c0_i32 = arith.constant 0 : i32
    %c0_i32_0 = arith.constant 0 : i32
    %c0_i32_1 = arith.constant 0 : i32
    return %c0_i32, %c0_i32_0 : i32, i32
  }
  func.func @transform_2(%arg0: i32, %arg1: i32) -> (i32, i32) {
    %c0_i32 = arith.constant 0 : i32
    %c0_i32_0 = arith.constant 0 : i32
    %c0_i32_1 = arith.constant 0 : i32
    return %c0_i32, %c0_i32_0 : i32, i32
  }
  func.func @transform_3(%arg0: i32, %arg1: i32) -> (i32, i32) {
    %c0_i32 = arith.constant 0 : i32
    %c0_i32_0 = arith.constant 0 : i32
    %c0_i32_1 = arith.constant 0 : i32
    return %c0_i32, %c0_i32_0 : i32, i32
  }
  func.func @transform_4(%arg0: i32, %arg1: i32) -> (i32, i32) {
    %c0_i32 = arith.constant 0 : i32
    %c0_i32_0 = arith.constant 0 : i32
    %c0_i32_1 = arith.constant 0 : i32
    return %c0_i32, %c0_i32_0 : i32, i32
  }
  func.func @transform_5(%arg0: i32, %arg1: i32) -> (i32, i32, i32) {
    %c0_i32 = arith.constant 0 : i32
    %c0_i32_0 = arith.constant 0 : i32
    %c0_i32_1 = arith.constant 0 : i32
    return %arg0, %c0_i32, %c0_i32_0 : i32, i32, i32
  }
}

</mosaic_0001>

<llo_original>
// kernel: tpu_custom_call.1
$region0: #{tpu_custom_call.1}
  #allocation0 [shape = 'u32[]', space=smem, size = 0x4, offset = 0x4, fixed_abs, tag = 'smem constant byte address 0x4 - core index']
  #allocation1 [shape = 'u32[144,128]{1,0:T(1,128)}', space=vmem, size = 0x12000, scoped, tag = 'internal scratch']
  #allocation2 [shape = 'f32[64,1]{1,0:T(8,128)}', space=vmem, size = 0x8000, scoped, tag = 'scratch operand']
  %s0 = inlined_call_operand.vmem [shape: f32[2,4,256], index: 0, kind: input, shape index: {}]
  %s1 = inlined_call_operand.vmem [shape: f32[64,4], index: 1, kind: input, shape index: {}]
  %s2 = inlined_call_operand.vmem [shape: f32[64,1], index: 2, kind: input, shape index: {}]
  %s3 = inlined_call_operand.vmem [shape: f32[64,128], index: 3, kind: input, shape index: {}]
  %s4 = inlined_call_operand.vmem [shape: f32[1,128], index: 4, kind: input, shape index: {}]
  %s5 = inlined_call_operand.hbm [shape: f32[2,1,128], index: 5, kind: output, shape index: {}]
  %s6 = sld [smem:[#allocation0]]
  $region61: #{tpu_custom_call.1} parent=0
    _
  %s8 = ssub.s32 1, %s6
  %s9 = scalar_select 0, %s8, %s6
  $region1: #{tpu_custom_call.1} parent=0
    #allocation3 [shape = 'u8[1024]{0}', space=vmem, size = 0x400, scoped, tag = 'output window, operand 0']
    #allocation4 [shape = 's32[2]{0}', space=sflag, size = 0x8, scoped, tag = 'scoped memory for tpu_custom_call.1']
    %10 = vsyncpa [#allocation4], 0
    %s11 = scalar_lea.sflag [#allocation4], 1
    %12 = vsyncpa %s11, 0
    loop: start=0, step=1, limit=4
    $region2: #{tpu_custom_call.1} parent=1 // loop_pre_header
      _
    $region3: #{tpu_custom_call.1} parent=1 // loop_header
      %s14 = sphi 0, %s18
      %p15 = scmp.ge.s32.totalorder %s14, 4
      %s21 = sphi 0, %s33
      %s22 = sphi 0, %s29
      %s23 = sphi 0, %s21
      %s24 = sphi 0, %s22
      %s25 = sphi 0, %s23
      %s26 = sphi 0, %s24
      %s38 = sphi 0, %s40
      %s41 = sphi 0, %s38
      %s42 = sphi 0, %s41
      %s58 = sphi 0, %s42
      %s62 = sphi 0, %s62
      %s64 = sphi 0, %s62
      %s65 = sphi 0, %s64
      %s79 = sphi 0, %s65
      %s83 = sphi 0, %s83
      %s85 = sphi 0, %s83
      %s86 = sphi 0, %s85
      %s100 = sphi 0, %s86
      %s104 = sphi 0, %s104
      %s106 = sphi 0, %s104
      %s107 = sphi 0, %s106
      %s121 = sphi 0, %s107
      %s125 = sphi 0, %s125
      %s127 = sphi 0, %s125
      %s128 = sphi 0, %s127
      %s142 = sphi 0, %s128
      %s148 = sphi 0, %s150
      %s151 = sphi 0, %s148
      %s152 = sphi 0, %s151
      %s168 = sphi 0, %s152
    $region4: #{tpu_custom_call.1} parent=1 // loop_header_branch
      %17 = sbr.rel (%p15) target = $region8
    $region5: #{tpu_custom_call.1} parent=1 // loop_body
      %s19 = ssub.s32 %s14, 1
      %s20 = ssub.s32 %s14, 2
      %s27 = sadd.s32 1, %s22
      %p28 = scmp.ge.s32.totalorder %s27, 1
      %s29 = scalar_select %p28, 0, %s27
      %s30 = sadd.s32 1, %s21
      %s31 = scalar_select %p28, %s30, %s21
      %p32 = scmp.ge.s32.totalorder %s31, 2
      %s33 = scalar_select %p32, 0, %s31
      %s34 = ssub.s32 %s21, %s33
      %s35 = ssub.s32 %s22, %s29
      %s36 = sor.u32 %s34, %s35
      %p37 = scmp.eq.s32.totalorder %s36, 0
      %s39 = sadd.s32 %s38, 1
      %s40 = scalar_select %p37, %s38, %s39
      %p43 = pneg %p37
      %p44 = scmp.eq.s32.totalorder %s14, 1
      %p45 = por %p43, %p44
      %p46 = scmp.ne.s32.totalorder %s38, %s41
      %p47 = scmp.eq.s32.totalorder %s14, 0
      %p48 = por %p46, %p47
      %p49 = scmp.ne.s32.totalorder %s38, %s41
      %p50 = scmp.eq.s32.totalorder %s19, 1
      %p51 = por %p49, %p50
      %p52 = scmp.ne.s32.totalorder %s41, %s42
      %p53 = scmp.eq.s32.totalorder %s19, 0
      %p54 = por %p52, %p53
      %p55 = scmp.ne.s32.totalorder %s41, %s42
      %p56 = scmp.eq.s32.totalorder %s20, 1
      %p57 = por %p55, %p56
      %p59 = scmp.ne.s32.totalorder %s42, %s58
      %p60 = scmp.eq.s32.totalorder %s20, 0
      %p61 = por %p59, %p60
      %s63 = sadd.s32 %s62, 1
      %p66 = scmp.eq.s32.totalorder %s14, 1
      %p67 = scmp.ne.s32.totalorder %s62, %s64
      %p68 = scmp.eq.s32.totalorder %s14, 0
      %p69 = por %p67, %p68
      %p70 = scmp.ne.s32.totalorder %s62, %s64
      %p71 = scmp.eq.s32.totalorder %s19, 1
      %p72 = por %p70, %p71
      %p73 = scmp.ne.s32.totalorder %s64, %s65
      %p74 = scmp.eq.s32.totalorder %s19, 0
      %p75 = por %p73, %p74
      %p76 = scmp.ne.s32.totalorder %s64, %s65
      %p77 = scmp.eq.s32.totalorder %s20, 1
      %p78 = por %p76, %p77
      %p80 = scmp.ne.s32.totalorder %s65, %s79
      %p81 = scmp.eq.s32.totalorder %s20, 0
      %p82 = por %p80, %p81
      %s84 = sadd.s32 %s83, 1
      %p87 = scmp.eq.s32.totalorder %s14, 1
      %p88 = scmp.ne.s32.totalorder %s83, %s85
      %p89 = scmp.eq.s32.totalorder %s14, 0
      %p90 = por %p88, %p89
      %p91 = scmp.ne.s32.totalorder %s83, %s85
      %p92 = scmp.eq.s32.totalorder %s19, 1
      %p93 = por %p91, %p92
      %p94 = scmp.ne.s32.totalorder %s85, %s86
      %p95 = scmp.eq.s32.totalorder %s19, 0
      %p96 = por %p94, %p95
      %p97 = scmp.ne.s32.totalorder %s85, %s86
      %p98 = scmp.eq.s32.totalorder %s20, 1
      %p99 = por %p97, %p98
      %p101 = scmp.ne.s32.totalorder %s86, %s100
      %p102 = scmp.eq.s32.totalorder %s20, 0
      %p103 = por %p101, %p102
      %s105 = sadd.s32 %s104, 1
      %p108 = scmp.eq.s32.totalorder %s14, 1
      %p109 = scmp.ne.s32.totalorder %s104, %s106
      %p110 = scmp.eq.s32.totalorder %s14, 0
      %p111 = por %p109, %p110
      %p112 = scmp.ne.s32.totalorder %s104, %s106
      %p113 = scmp.eq.s32.totalorder %s19, 1
      %p114 = por %p112, %p113
      %p115 = scmp.ne.s32.totalorder %s106, %s107
      %p116 = scmp.eq.s32.totalorder %s19, 0
      %p117 = por %p115, %p116
      %p118 = scmp.ne.s32.totalorder %s106, %s107
      %p119 = scmp.eq.s32.totalorder %s20, 1
      %p120 = por %p118, %p119
      %p122 = scmp.ne.s32.totalorder %s107, %s121
      %p123 = scmp.eq.s32.totalorder %s20, 0
      %p124 = por %p122, %p123
      %s126 = sadd.s32 %s125, 1
      %p129 = scmp.eq.s32.totalorder %s14, 1
      %p130 = scmp.ne.s32.totalorder %s125, %s127
      %p131 = scmp.eq.s32.totalorder %s14, 0
      %p132 = por %p130, %p131
      %p133 = scmp.ne.s32.totalorder %s125, %s127
      %p134 = scmp.eq.s32.totalorder %s19, 1
      %p135 = por %p133, %p134
      %p136 = scmp.ne.s32.totalorder %s127, %s128
      %p137 = scmp.eq.s32.totalorder %s19, 0
      %p138 = por %p136, %p137
      %p139 = scmp.ne.s32.totalorder %s127, %s128
      %p140 = scmp.eq.s32.totalorder %s20, 1
      %p141 = por %p139, %p140
      %p143 = scmp.ne.s32.totalorder %s128, %s142
      %p144 = scmp.eq.s32.totalorder %s20, 0
      %p145 = por %p143, %p144
      %s146 = ssub.s32 %s21, %s33
      %p147 = scmp.eq.s32.totalorder %s146, 0
      %s149 = sadd.s32 %s148, 1
      %s150 = scalar_select %p147, %s148, %s149
      %p153 = pneg %p147
      %p154 = scmp.eq.s32.totalorder %s14, 1
      %p155 = por %p153, %p154
      %p156 = scmp.ne.s32.totalorder %s148, %s151
      %p157 = scmp.eq.s32.totalorder %s14, 0
      %p158 = por %p156, %p157
      %p159 = scmp.ne.s32.totalorder %s148, %s151
      %p160 = scmp.eq.s32.totalorder %s19, 1
      %p161 = por %p159, %p160
      %p162 = scmp.ne.s32.totalorder %s151, %s152
      %p163 = scmp.eq.s32.totalorder %s19, 0
      %p164 = por %p162, %p163
      %p165 = scmp.ne.s32.totalorder %s151, %s152
      %p166 = scmp.eq.s32.totalorder %s20, 1
      %p167 = por %p165, %p166
      %p169 = scmp.ne.s32.totalorder %s152, %s168
      %p170 = scmp.eq.s32.totalorder %s20, 0
      %p171 = por %p169, %p170
      %p172 = scmp.le.s32.totalorder 1, %s14
      %p173 = scmp.lt.s32.totalorder %s14, 3
      %p174 = pnand %p172, %p173
      %p175 = pneg %p174
      // Predicated region
      $region9: #{tpu_custom_call.1} parent=5 // pred_check
        _
      $region10: #{tpu_custom_call.1} parent=5 // pred_check_branch
        %177 = sbr.rel (%p174) target = $region12
      $region11: #{tpu_custom_call.1} parent=5 // pred_region
        %s178 = ssub.s32 %s14, 1
        // Predicated region
        $region13: #{tpu_custom_call.1} parent=11 // pred_check
          %p179 = pneg %p75
        $region14: #{tpu_custom_call.1} parent=11 // pred_check_branch
          %181 = sbr.rel (%p179) target = $region16
        $region15: #{tpu_custom_call.1} parent=11 // pred_region
          _
        $region16: #{tpu_custom_call.1} parent=11 // pred_fallthru
          _
        // Predicated region
        $region17: #{tpu_custom_call.1} parent=11 // pred_check
          %p182 = pneg %p96
        $region18: #{tpu_custom_call.1} parent=11 // pred_check_branch
          %184 = sbr.rel (%p182) target = $region20
        $region19: #{tpu_custom_call.1} parent=11 // pred_region
          _
        $region20: #{tpu_custom_call.1} parent=11 // pred_fallthru
          _
        // Predicated region
        $region21: #{tpu_custom_call.1} parent=11 // pred_check
          %p185 = pneg %p117
        $region22: #{tpu_custom_call.1} parent=11 // pred_check_branch
          %187 = sbr.rel (%p185) target = $region24
        $region23: #{tpu_custom_call.1} parent=11 // pred_region
          _
        $region24: #{tpu_custom_call.1} parent=11 // pred_fallthru
          _
        // Predicated region
        $region25: #{tpu_custom_call.1} parent=11 // pred_check
          %p188 = pneg %p138
        $region26: #{tpu_custom_call.1} parent=11 // pred_check_branch
          %190 = sbr.rel (%p188) target = $region28
        $region27: #{tpu_custom_call.1} parent=11 // pred_region
          _
        $region28: #{tpu_custom_call.1} parent=11 // pred_fallthru
          _
      $region12: #{tpu_custom_call.1} parent=5 // pred_fallthru
        _
      %p191 = scmp.lt.s32.totalorder %s14, 2
      // Predicated region
      $region29: #{tpu_custom_call.1} parent=5 // pred_check
        %p192 = pneg %p191
      $region30: #{tpu_custom_call.1} parent=5 // pred_check_branch
        %194 = sbr.rel (%p192) target = $region32
      $region31: #{tpu_custom_call.1} parent=5 // pred_region
        // Predicated region
        $region33: #{tpu_custom_call.1} parent=31 // pred_check
          %p195 = pneg %p48
        $region34: #{tpu_custom_call.1} parent=31 // pred_check_branch
          %197 = sbr.rel (%p195) target = $region36
        $region35: #{tpu_custom_call.1} parent=31 // pred_region
          %s198 = smul.u32 2, %s22
          %p199 = scmp.lt.s32.totalorder %s21, 1
          %s200 = scalar_select %p199, %s21, 1
          %p201 = scmp.lt.s32.totalorder %s198, 1
          %s202 = scalar_select %p201, %s198, 1
          %s203 = smul.addr %s200, 2
          %s204 = sadd.s32 %s202, %s203
          %s205 = smul.addr %s204, 4
          %s206 = scalar_lea.vmem %s0, %s205
          %s207 = smul.u32 2, %s22
        $region36: #{tpu_custom_call.1} parent=31 // pred_fallthru
          _
      $region32: #{tpu_custom_call.1} parent=5 // pred_fallthru
        _
      %p208 = scmp.le.s32.totalorder 1, %s14
      %p209 = scmp.lt.s32.totalorder %s14, 3
      %p210 = pnand %p208, %p209
      %p211 = pneg %p210
      // Predicated region
      $region37: #{tpu_custom_call.1} parent=5 // pred_check
        _
      $region38: #{tpu_custom_call.1} parent=5 // pred_check_branch
        %213 = sbr.rel (%p210) target = $region40
      $region39: #{tpu_custom_call.1} parent=5 // pred_region
        %s214 = ssub.s32 %s14, 1
        %s215 = smul.u32 2, %s24
        %p216 = scmp.lt.s32.totalorder %s23, 1
        %s217 = scalar_select %p216, %s23, 1
        %p218 = scmp.lt.s32.totalorder %s215, 1
        %s219 = scalar_select %p218, %s215, 1
        %s220 = smul.addr %s217, 2
        %s221 = sadd.s32 %s219, %s220
        %s222 = smul.addr %s221, 4
        %s223 = scalar_lea.vmem %s0, %s222
        %p224 = pneg %p54
        %p225 = pneg %p51
        %p226 = pneg %p75
        %p227 = pneg %p72
        %p228 = pneg %p96
        %p229 = pneg %p93
        %p230 = pneg %p117
        %p231 = pneg %p114
        %p232 = pneg %p138
        %p233 = pneg %p135
        %p234 = pneg %p164
        %p235 = pneg %p161
        %s236 = sand.u32 %s151, 1
        %s237 = scalar_lea.sflag [#allocation4], %s236
        %s238 = sand.u32 %s151, 1
        %s239 = scalar_lea.vmem [#allocation3], %s238
        %s240 = smul.u32 2, %s24
        %p241 = scmp.lt.s32.totalorder %s23, 1
        %s242 = scalar_select %p241, %s23, 1
        %p243 = scmp.lt.s32.totalorder %s240, 1
        %s244 = scalar_select %p243, %s240, 1
        %s245 = smul.addr %s242, 2
        %s246 = sadd.s32 %s244, %s245
        %s247 = smul.addr %s246, 4
        %s248 = scalar_lea.vmem %s0, %s247
        %s249 = smul.u32 2, %s24
        %p250 = scmp.eq.s32.totalorder %s24, 0
        // Predicated region
        $region41: #{tpu_custom_call.1} parent=39 // pred_check
          %p251 = pneg %p250
        $region42: #{tpu_custom_call.1} parent=39 // pred_check_branch
          %253 = sbr.rel (%p251) target = $region44
        $region43: #{tpu_custom_call.1} parent=39 // pred_region
          %vm254 = vcmask 7168
          %255 = vst.msk [vmem:[#allocation2] sm:$0xff] %vm254, 0.0
          %256 = vst.msk [vmem:[#allocation2 + $0x8] sm:$0xff] %vm254, 0.0
          %257 = vst.msk [vmem:[#allocation2 + $0x10] sm:$0xff] %vm254, 0.0
          %258 = vst.msk [vmem:[#allocation2 + $0x18] sm:$0xff] %vm254, 0.0
          %259 = vst.msk [vmem:[#allocation2 + $0x20] sm:$0xff] %vm254, 0.0
          %260 = vst.msk [vmem:[#allocation2 + $0x28] sm:$0xff] %vm254, 0.0
          %261 = vst.msk [vmem:[#allocation2 + $0x30] sm:$0xff] %vm254, 0.0
          %262 = vst.msk [vmem:[#allocation2 + $0x38] sm:$0xff] %vm254, 0.0
        $region44: #{tpu_custom_call.1} parent=39 // pred_fallthru
          _
        %v263 = vld [vmem:[%s1] sm:$0xff]
        %v264 = vld [vmem:[%s1 + $0x8] sm:$0xff]
        %v265 = vld [vmem:[%s1 + $0x10] sm:$0xff]
        %v266 = vld [vmem:[%s1 + $0x18] sm:$0xff]
        %v267 = vld [vmem:[%s1 + $0x20] sm:$0xff]
        %v268 = vld [vmem:[%s1 + $0x28] sm:$0xff]
        %v269 = vld [vmem:[%s1 + $0x30] sm:$0xff]
        %v270 = vld [vmem:[%s1 + $0x38] sm:$0xff]
        %v271 = vld [vmem:[%s2] sm:$0xff]
        %v272 = vld [vmem:[%s2 + $0x8] sm:$0xff]
        %v273 = vld [vmem:[%s2 + $0x10] sm:$0xff]
        %v274 = vld [vmem:[%s2 + $0x18] sm:$0xff]
        %v275 = vld [vmem:[%s2 + $0x20] sm:$0xff]
        %v276 = vld [vmem:[%s2 + $0x28] sm:$0xff]
        %v277 = vld [vmem:[%s2 + $0x30] sm:$0xff]
        %v278 = vld [vmem:[%s2 + $0x38] sm:$0xff]
        %v279 = vld [vmem:[%s248] ss:$4 sm:$0x3]
        %281 = vset.pattern.permute.xlu0 0
        %282 = vperm.xlu0 %281, %v263
        %v283 = vpop.permute.xlu0 %282
        %286 = vset.pattern.permute.xlu0 0
        %287 = vperm.xlu0 %286, %v264
        %v288 = vpop.permute.xlu0 %287
        %291 = vset.pattern.permute.xlu0 0
        %292 = vperm.xlu0 %291, %v265
        %v293 = vpop.permute.xlu0 %292
        %296 = vset.pattern.permute.xlu0 0
        %297 = vperm.xlu0 %296, %v266
        %v298 = vpop.permute.xlu0 %297
        %301 = vset.pattern.permute.xlu0 0
        %302 = vperm.xlu0 %301, %v267
        %v303 = vpop.permute.xlu0 %302
        %306 = vset.pattern.permute.xlu0 0
        %307 = vperm.xlu0 %306, %v268
        %v308 = vpop.permute.xlu0 %307
        %311 = vset.pattern.permute.xlu0 0
        %312 = vperm.xlu0 %311, %v269
        %v313 = vpop.permute.xlu0 %312
        %316 = vset.pattern.permute.xlu0 0
        %317 = vperm.xlu0 %316, %v270
        %v318 = vpop.permute.xlu0 %317
        %v321 = vlaneseq
        %v322 = vshrl.u32 %v321, 7
        %v323 = vsub.s32 0, %v322
        %v324 = vrot.slane %v279, %v323
        %v325 = vlaneseq
        %v326 = vshrl.u32 %v325, 7
        %v327 = vsub.s32 1, %v326
        %v328 = vrot.slane %v279, %v327
        %v331 = vmul.f32 %v283, %v324
        %v332 = vmul.f32 %v283, %v328
        %v333 = vmul.f32 %v288, %v324
        %v334 = vmul.f32 %v288, %v328
        %v335 = vmul.f32 %v293, %v324
        %v336 = vmul.f32 %v293, %v328
        %v337 = vmul.f32 %v298, %v324
        %v338 = vmul.f32 %v298, %v328
        %v339 = vmul.f32 %v303, %v324
        %v340 = vmul.f32 %v303, %v328
        %v341 = vmul.f32 %v308, %v324
        %v342 = vmul.f32 %v308, %v328
        %v343 = vmul.f32 %v313, %v324
        %v344 = vmul.f32 %v313, %v328
        %v345 = vmul.f32 %v318, %v324
        %v346 = vmul.f32 %v318, %v328
        %s347 = scalar_lea.vmem %s248, 1
        %v348 = vld [vmem:[%s347] ss:$4 sm:$0x3]
        %349 = vset.pattern.permute.xlu0 1
        %350 = vperm.xlu0 %349, %v263
        %v351 = vpop.permute.xlu0 %350
        %353 = vset.pattern.permute.xlu0 1
        %354 = vperm.xlu0 %353, %v264
        %v355 = vpop.permute.xlu0 %354
        %357 = vset.pattern.permute.xlu0 1
        %358 = vperm.xlu0 %357, %v265
        %v359 = vpop.permute.xlu0 %358
        %361 = vset.pattern.permute.xlu0 1
        %362 = vperm.xlu0 %361, %v266
        %v363 = vpop.permute.xlu0 %362
        %365 = vset.pattern.permute.xlu0 1
        %366 = vperm.xlu0 %365, %v267
        %v367 = vpop.permute.xlu0 %366
        %369 = vset.pattern.permute.xlu0 1
        %370 = vperm.xlu0 %369, %v268
        %v371 = vpop.permute.xlu0 %370
        %373 = vset.pattern.permute.xlu0 1
        %374 = vperm.xlu0 %373, %v269
        %v375 = vpop.permute.xlu0 %374
        %377 = vset.pattern.permute.xlu0 1
        %378 = vperm.xlu0 %377, %v270
        %v379 = vpop.permute.xlu0 %378
        %v382 = vlaneseq
        %v383 = vshrl.u32 %v382, 7
        %v384 = vsub.s32 0, %v383
        %v385 = vrot.slane %v348, %v384
        %v386 = vlaneseq
        %v387 = vshrl.u32 %v386, 7
        %v388 = vsub.s32 1, %v387
        %v389 = vrot.slane %v348, %v388
        %v392 = vmul.f32 %v351, %v385
        %v393 = vmul.f32 %v351, %v389
        %v394 = vmul.f32 %v355, %v385
        %v395 = vmul.f32 %v355, %v389
        %v396 = vmul.f32 %v359, %v385
        %v397 = vmul.f32 %v359, %v389
        %v398 = vmul.f32 %v363, %v385
        %v399 = vmul.f32 %v363, %v389
        %v400 = vmul.f32 %v367, %v385
        %v401 = vmul.f32 %v367, %v389
        %v402 = vmul.f32 %v371, %v385
        %v403 = vmul.f32 %v371, %v389
        %v404 = vmul.f32 %v375, %v385
        %v405 = vmul.f32 %v375, %v389
        %v406 = vmul.f32 %v379, %v385
        %v407 = vmul.f32 %v379, %v389
        %v408 = vadd.f32 %v331, %v392
        %v409 = vadd.f32 %v332, %v393
        %v410 = vadd.f32 %v333, %v394
        %v411 = vadd.f32 %v334, %v395
        %v412 = vadd.f32 %v335, %v396
        %v413 = vadd.f32 %v336, %v397
        %v414 = vadd.f32 %v337, %v398
        %v415 = vadd.f32 %v338, %v399
        %v416 = vadd.f32 %v339, %v400
        %v417 = vadd.f32 %v340, %v401
        %v418 = vadd.f32 %v341, %v402
        %v419 = vadd.f32 %v342, %v403
        %v420 = vadd.f32 %v343, %v404
        %v421 = vadd.f32 %v344, %v405
        %v422 = vadd.f32 %v345, %v406
        %v423 = vadd.f32 %v346, %v407
        %s424 = scalar_lea.vmem %s248, 2
        %v425 = vld [vmem:[%s424] ss:$4 sm:$0x3]
        %426 = vset.pattern.permute.xlu0 2
        %427 = vperm.xlu0 %426, %v263
        %v428 = vpop.permute.xlu0 %427
        %430 = vset.pattern.permute.xlu0 2
        %431 = vperm.xlu0 %430, %v264
        %v432 = vpop.permute.xlu0 %431
        %434 = vset.pattern.permute.xlu0 2
        %435 = vperm.xlu0 %434, %v265
        %v436 = vpop.permute.xlu0 %435
        %438 = vset.pattern.permute.xlu0 2
        %439 = vperm.xlu0 %438, %v266
        %v440 = vpop.permute.xlu0 %439
        %442 = vset.pattern.permute.xlu0 2
        %443 = vperm.xlu0 %442, %v267
        %v444 = vpop.permute.xlu0 %443
        %446 = vset.pattern.permute.xlu0 2
        %447 = vperm.xlu0 %446, %v268
        %v448 = vpop.permute.xlu0 %447
        %450 = vset.pattern.permute.xlu0 2
        %451 = vperm.xlu0 %450, %v269
        %v452 = vpop.permute.xlu0 %451
        %454 = vset.pattern.permute.xlu0 2
        %455 = vperm.xlu0 %454, %v270
        %v456 = vpop.permute.xlu0 %455
        %v459 = vlaneseq
        %v460 = vshrl.u32 %v459, 7
        %v461 = vsub.s32 0, %v460
        %v462 = vrot.slane %v425, %v461
        %v463 = vlaneseq
        %v464 = vshrl.u32 %v463, 7
        %v465 = vsub.s32 1, %v464
        %v466 = vrot.slane %v425, %v465
        %v469 = vmul.f32 %v428, %v462
        %v470 = vmul.f32 %v428, %v466
        %v471 = vmul.f32 %v432, %v462
        %v472 = vmul.f32 %v432, %v466
        %v473 = vmul.f32 %v436, %v462
        %v474 = vmul.f32 %v436, %v466
        %v475 = vmul.f32 %v440, %v462
        %v476 = vmul.f32 %v440, %v466
        %v477 = vmul.f32 %v444, %v462
        %v478 = vmul.f32 %v444, %v466
        %v479 = vmul.f32 %v448, %v462
        %v480 = vmul.f32 %v448, %v466
        %v481 = vmul.f32 %v452, %v462
        %v482 = vmul.f32 %v452, %v466
        %v483 = vmul.f32 %v456, %v462
        %v484 = vmul.f32 %v456, %v466
        %v485 = vadd.f32 %v408, %v469
        %v486 = vadd.f32 %v409, %v470
        %v487 = vadd.f32 %v410, %v471
        %v488 = vadd.f32 %v411, %v472
        %v489 = vadd.f32 %v412, %v473
        %v490 = vadd.f32 %v413, %v474
        %v491 = vadd.f32 %v414, %v475
        %v492 = vadd.f32 %v415, %v476
        %v493 = vadd.f32 %v416, %v477
        %v494 = vadd.f32 %v417, %v478
        %v495 = vadd.f32 %v418, %v479
        %v496 = vadd.f32 %v419, %v480
        %v497 = vadd.f32 %v420, %v481
        %v498 = vadd.f32 %v421, %v482
        %v499 = vadd.f32 %v422, %v483
        %v500 = vadd.f32 %v423, %v484
        %s501 = scalar_lea.vmem %s248, 3
        %v502 = vld [vmem:[%s501] ss:$4 sm:$0x3]
        %503 = vset.pattern.permute.xlu0 3
        %504 = vperm.xlu0 %503, %v263
        %v505 = vpop.permute.xlu0 %504
        %507 = vset.pattern.permute.xlu0 3
        %508 = vperm.xlu0 %507, %v264
        %v509 = vpop.permute.xlu0 %508
        %511 = vset.pattern.permute.xlu0 3
        %512 = vperm.xlu0 %511, %v265
        %v513 = vpop.permute.xlu0 %512
        %515 = vset.pattern.permute.xlu0 3
        %516 = vperm.xlu0 %515, %v266
        %v517 = vpop.permute.xlu0 %516
        %519 = vset.pattern.permute.xlu0 3
        %520 = vperm.xlu0 %519, %v267
        %v521 = vpop.permute.xlu0 %520
        %523 = vset.pattern.permute.xlu0 3
        %524 = vperm.xlu0 %523, %v268
        %v525 = vpop.permute.xlu0 %524
        %527 = vset.pattern.permute.xlu0 3
        %528 = vperm.xlu0 %527, %v269
        %v529 = vpop.permute.xlu0 %528
        %531 = vset.pattern.permute.xlu0 3
        %532 = vperm.xlu0 %531, %v270
        %v533 = vpop.permute.xlu0 %532
        %v536 = vlaneseq
        %v537 = vshrl.u32 %v536, 7
        %v538 = vsub.s32 0, %v537
        %v539 = vrot.slane %v502, %v538
        %v540 = vlaneseq
        %v541 = vshrl.u32 %v540, 7
        %v542 = vsub.s32 1, %v541
        %v543 = vrot.slane %v502, %v542
        %v546 = vmul.f32 %v505, %v539
        %v547 = vmul.f32 %v505, %v543
        %v548 = vmul.f32 %v509, %v539
        %v549 = vmul.f32 %v509, %v543
        %v550 = vmul.f32 %v513, %v539
        %v551 = vmul.f32 %v513, %v543
        %v552 = vmul.f32 %v517, %v539
        %v553 = vmul.f32 %v517, %v543
        %v554 = vmul.f32 %v521, %v539
        %v555 = vmul.f32 %v521, %v543
        %v556 = vmul.f32 %v525, %v539
        %v557 = vmul.f32 %v525, %v543
        %v558 = vmul.f32 %v529, %v539
        %v559 = vmul.f32 %v529, %v543
        %v560 = vmul.f32 %v533, %v539
        %v561 = vmul.f32 %v533, %v543
        %v562 = vadd.f32 %v485, %v546
        %v563 = vadd.f32 %v486, %v547
        %v564 = vadd.f32 %v487, %v548
        %v565 = vadd.f32 %v488, %v549
        %v566 = vadd.f32 %v489, %v550
        %v567 = vadd.f32 %v490, %v551
        %v568 = vadd.f32 %v491, %v552
        %v569 = vadd.f32 %v492, %v553
        %v570 = vadd.f32 %v493, %v554
        %v571 = vadd.f32 %v494, %v555
        %v572 = vadd.f32 %v495, %v556
        %v573 = vadd.f32 %v496, %v557
        %v574 = vadd.f32 %v497, %v558
        %v575 = vadd.f32 %v498, %v559
        %v576 = vadd.f32 %v499, %v560
        %v577 = vadd.f32 %v500, %v561
        %579 = vset.pattern.permute.xlu0 0
        %580 = vperm.xlu0 %579, %v271
        %v581 = vpop.permute.xlu0 %580
        %584 = vset.pattern.permute.xlu0 0
        %585 = vperm.xlu0 %584, %v272
        %v586 = vpop.permute.xlu0 %585
        %589 = vset.pattern.permute.xlu0 0
        %590 = vperm.xlu0 %589, %v273
        %v591 = vpop.permute.xlu0 %590
        %594 = vset.pattern.permute.xlu0 0
        %595 = vperm.xlu0 %594, %v274
        %v596 = vpop.permute.xlu0 %595
        %599 = vset.pattern.permute.xlu0 0
        %600 = vperm.xlu0 %599, %v275
        %v601 = vpop.permute.xlu0 %600
        %604 = vset.pattern.permute.xlu0 0
        %605 = vperm.xlu0 %604, %v276
        %v606 = vpop.permute.xlu0 %605
        %609 = vset.pattern.permute.xlu0 0
        %610 = vperm.xlu0 %609, %v277
        %v611 = vpop.permute.xlu0 %610
        %614 = vset.pattern.permute.xlu0 0
        %615 = vperm.xlu0 %614, %v278
        %v616 = vpop.permute.xlu0 %615
        %v618 = vadd.f32 %v562, %v581
        %v619 = vadd.f32 %v563, %v581
        %v620 = vadd.f32 %v564, %v586
        %v621 = vadd.f32 %v565, %v586
        %v622 = vadd.f32 %v566, %v591
        %v623 = vadd.f32 %v567, %v591
        %v624 = vadd.f32 %v568, %v596
        %v625 = vadd.f32 %v569, %v596
        %v626 = vadd.f32 %v570, %v601
        %v627 = vadd.f32 %v571, %v601
        %v628 = vadd.f32 %v572, %v606
        %v629 = vadd.f32 %v573, %v606
        %v630 = vadd.f32 %v574, %v611
        %v631 = vadd.f32 %v575, %v611
        %v632 = vadd.f32 %v576, %v616
        %v633 = vadd.f32 %v577, %v616
        %v634 = vmax.f32 %v618, 0.0
        %v635 = vmax.f32 %v619, 0.0
        %v636 = vmax.f32 %v620, 0.0
        %v637 = vmax.f32 %v621, 0.0
        %v638 = vmax.f32 %v622, 0.0
        %v639 = vmax.f32 %v623, 0.0
        %v640 = vmax.f32 %v624, 0.0
        %v641 = vmax.f32 %v625, 0.0
        %v642 = vmax.f32 %v626, 0.0
        %v643 = vmax.f32 %v627, 0.0
        %v644 = vmax.f32 %v628, 0.0
        %v645 = vmax.f32 %v629, 0.0
        %v646 = vmax.f32 %v630, 0.0
        %v647 = vmax.f32 %v631, 0.0
        %v648 = vmax.f32 %v632, 0.0
        %v649 = vmax.f32 %v633, 0.0
        %v650 = vadd.f32 %v634, %v635
        %651 = vadd.xlane.f32.xlu0 %v650
        %v652 = vpop.xlane.xlu0 %651
        %v653 = vadd.f32 %v636, %v637
        %654 = vadd.xlane.f32.xlu0 %v653
        %v655 = vpop.xlane.xlu0 %654
        %v656 = vadd.f32 %v638, %v639
        %657 = vadd.xlane.f32.xlu0 %v656
        %v658 = vpop.xlane.xlu0 %657
        %v659 = vadd.f32 %v640, %v641
        %660 = vadd.xlane.f32.xlu0 %v659
        %v661 = vpop.xlane.xlu0 %660
        %v662 = vadd.f32 %v642, %v643
        %663 = vadd.xlane.f32.xlu0 %v662
        %v664 = vpop.xlane.xlu0 %663
        %v665 = vadd.f32 %v644, %v645
        %666 = vadd.xlane.f32.xlu0 %v665
        %v667 = vpop.xlane.xlu0 %666
        %v668 = vadd.f32 %v646, %v647
        %669 = vadd.xlane.f32.xlu0 %v668
        %v670 = vpop.xlane.xlu0 %669
        %v671 = vadd.f32 %v648, %v649
        %672 = vadd.xlane.f32.xlu0 %v671
        %v673 = vpop.xlane.xlu0 %672
        %v674 = vld [vmem:[#allocation2] sm:$0xff]
        %v675 = vld [vmem:[#allocation2 + $0x8] sm:$0xff]
        %v676 = vld [vmem:[#allocation2 + $0x10] sm:$0xff]
        %v677 = vld [vmem:[#allocation2 + $0x18] sm:$0xff]
        %v678 = vld [vmem:[#allocation2 + $0x20] sm:$0xff]
        %v679 = vld [vmem:[#allocation2 + $0x28] sm:$0xff]
        %v680 = vld [vmem:[#allocation2 + $0x30] sm:$0xff]
        %v681 = vld [vmem:[#allocation2 + $0x38] sm:$0xff]
        %v682 = vadd.f32 %v674, %v652
        %v683 = vadd.f32 %v675, %v655
        %v684 = vadd.f32 %v676, %v658
        %v685 = vadd.f32 %v677, %v661
        %v686 = vadd.f32 %v678, %v664
        %v687 = vadd.f32 %v679, %v667
        %v688 = vadd.f32 %v680, %v670
        %v689 = vadd.f32 %v681, %v673
        %vm690 = vcmask 7168
        %691 = vst.msk [vmem:[#allocation2] sm:$0xff] %vm690, %v682
        %692 = vst.msk [vmem:[#allocation2 + $0x8] sm:$0xff] %vm690, %v683
        %693 = vst.msk [vmem:[#allocation2 + $0x10] sm:$0xff] %vm690, %v684
        %694 = vst.msk [vmem:[#allocation2 + $0x18] sm:$0xff] %vm690, %v685
        %695 = vst.msk [vmem:[#allocation2 + $0x20] sm:$0xff] %vm690, %v686
        %696 = vst.msk [vmem:[#allocation2 + $0x28] sm:$0xff] %vm690, %v687
        %697 = vst.msk [vmem:[#allocation2 + $0x30] sm:$0xff] %vm690, %v688
        %698 = vst.msk [vmem:[#allocation2 + $0x38] sm:$0xff] %vm690, %v689
        // Predicated region
        $region45: #{tpu_custom_call.1} parent=39 // pred_check
          %p699 = pneg %p250
        $region46: #{tpu_custom_call.1} parent=39 // pred_check_branch
          %701 = sbr.rel (%p699) target = $region48
        $region47: #{tpu_custom_call.1} parent=39 // pred_region
          %v702 = vld [vmem:[#allocation2] sm:$0xff]
          %v703 = vld [vmem:[#allocation2 + $0x8] sm:$0xff]
          %v704 = vld [vmem:[#allocation2 + $0x10] sm:$0xff]
          %v705 = vld [vmem:[#allocation2 + $0x18] sm:$0xff]
          %v706 = vld [vmem:[#allocation2 + $0x20] sm:$0xff]
          %v707 = vld [vmem:[#allocation2 + $0x28] sm:$0xff]
          %v708 = vld [vmem:[#allocation2 + $0x30] sm:$0xff]
          %v709 = vld [vmem:[#allocation2 + $0x38] sm:$0xff]
          %v710 = vmul.f32 %v702, 0.00390625
          %v711 = vmul.f32 %v703, 0.00390625
          %v712 = vmul.f32 %v704, 0.00390625
          %v713 = vmul.f32 %v705, 0.00390625
          %v714 = vmul.f32 %v706, 0.00390625
          %v715 = vmul.f32 %v707, 0.00390625
          %v716 = vmul.f32 %v708, 0.00390625
          %v717 = vmul.f32 %v709, 0.00390625
          %v718 = vld [vmem:[%s3] sm:$0xff]
          %v719 = vld [vmem:[%s3 + $0x8] sm:$0xff]
          %v720 = vld [vmem:[%s3 + $0x10] sm:$0xff]
          %v721 = vld [vmem:[%s3 + $0x18] sm:$0xff]
          %v722 = vld [vmem:[%s3 + $0x20] sm:$0xff]
          %v723 = vld [vmem:[%s3 + $0x28] sm:$0xff]
          %v724 = vld [vmem:[%s3 + $0x30] sm:$0xff]
          %v725 = vld [vmem:[%s3 + $0x38] sm:$0xff]
          %727 = vset.pattern.permute.xlu0 0
          %728 = vperm.xlu0 %727, %v710
          %v729 = vpop.permute.xlu0 %728
          %732 = vset.pattern.permute.xlu0 0
          %733 = vperm.xlu0 %732, %v711
          %v734 = vpop.permute.xlu0 %733
          %737 = vset.pattern.permute.xlu0 0
          %738 = vperm.xlu0 %737, %v712
          %v739 = vpop.permute.xlu0 %738
          %742 = vset.pattern.permute.xlu0 0
          %743 = vperm.xlu0 %742, %v713
          %v744 = vpop.permute.xlu0 %743
          %747 = vset.pattern.permute.xlu0 0
          %748 = vperm.xlu0 %747, %v714
          %v749 = vpop.permute.xlu0 %748
          %752 = vset.pattern.permute.xlu0 0
          %753 = vperm.xlu0 %752, %v715
          %v754 = vpop.permute.xlu0 %753
          %757 = vset.pattern.permute.xlu0 0
          %758 = vperm.xlu0 %757, %v716
          %v759 = vpop.permute.xlu0 %758
          %762 = vset.pattern.permute.xlu0 0
          %763 = vperm.xlu0 %762, %v717
          %v764 = vpop.permute.xlu0 %763
          %v766 = vmul.f32 %v729, %v718
          %v767 = vmul.f32 %v734, %v719
          %v768 = vmul.f32 %v739, %v720
          %v769 = vmul.f32 %v744, %v721
          %v770 = vmul.f32 %v749, %v722
          %v771 = vmul.f32 %v754, %v723
          %v772 = vmul.f32 %v759, %v724
          %v773 = vmul.f32 %v764, %v725
          %v774 = vadd.f32 %v766, %v767
          %v775 = vadd.f32 %v774, %v768
          %v776 = vadd.f32 %v775, %v769
          %v777 = vadd.f32 %v776, %v770
          %v778 = vadd.f32 %v777, %v771
          %v779 = vadd.f32 %v778, %v772
          %v780 = vadd.f32 %v779, %v773
          %v781 = vrot.slane %v780, 4
          %v782 = vadd.f32 %v780, %v781
          %v783 = vrot.slane %v782, 2
          %v784 = vadd.f32 %v782, %v783
          %v785 = vrot.slane %v784, 1
          %v786 = vadd.f32 %v784, %v785
          %v787 = vld [vmem:[%s4] sm:$0x1]
          %v788 = vadd.f32 %v786, %v787
          %789 = vst [vmem:[%s239] sm:$0x1] %v788
        $region48: #{tpu_custom_call.1} parent=39 // pred_fallthru
          _
        %s790 = sand.u32 %s151, 1
        %s791 = scalar_lea.sflag [#allocation4], %s790
        %s792 = sand.u32 %s151, 1
        %s793 = scalar_lea.vmem [#allocation3], %s792
        // Predicated region
        $region49: #{tpu_custom_call.1} parent=39 // pred_check
          %p794 = pneg %p161
        $region50: #{tpu_custom_call.1} parent=39 // pred_check_branch
          %796 = sbr.rel (%p794) target = $region52
        $region51: #{tpu_custom_call.1} parent=39 // pred_region
          %s798 = ssub.s32 16, 16
          %799 = vsyncadd %s791, %s798
          %s800 = smul.addr %s23, 16
          %s801 = scalar_lea.hbm %s5, %s800
          %s803 = sshll.u32 %s793, 4
          %s804 = int_to_ptr.vmem [resolvable:$true] %s803
          %806 = dma.vmem_to_hbm [thread:$0]  %s804, 16, %s801, %s791
        $region52: #{tpu_custom_call.1} parent=39 // pred_fallthru
          _
      $region40: #{tpu_custom_call.1} parent=5 // pred_fallthru
        _
      %p807 = scmp.le.s32.totalorder 2, %s14
      // Predicated region
      $region53: #{tpu_custom_call.1} parent=5 // pred_check
        %p808 = pneg %p807
      $region54: #{tpu_custom_call.1} parent=5 // pred_check_branch
        %810 = sbr.rel (%p808) target = $region56
      $region55: #{tpu_custom_call.1} parent=5 // pred_region
        %s811 = ssub.s32 %s14, 2
        // Predicated region
        $region57: #{tpu_custom_call.1} parent=55 // pred_check
          %p812 = pneg %p167
        $region58: #{tpu_custom_call.1} parent=55 // pred_check_branch
          %814 = sbr.rel (%p812) target = $region60
        $region59: #{tpu_custom_call.1} parent=55 // pred_region
          %s815 = sand.u32 %s152, 1
          %s816 = scalar_lea.sflag [#allocation4], %s815
          %s817 = sand.u32 %s152, 1
          %s818 = scalar_lea.vmem [#allocation3], %s817
          %819 = dma.done %s816, 16
        $region60: #{tpu_custom_call.1} parent=55 // pred_fallthru
          _
      $region56: #{tpu_custom_call.1} parent=5 // pred_fallthru
        _
    $region6: #{tpu_custom_call.1} parent=1 // loop_footer
      %s18 = sadd.s32 1, %s14
    $region7: #{tpu_custom_call.1} parent=1 // loop_footer_branch
      %13 = sbr.rel target = $region3
    $region8: #{tpu_custom_call.1} parent=1 // loop_exit
      _
    %820 = vsyncpa [#allocation4], 1
    %s821 = scalar_lea.sflag [#allocation4], 1
    %822 = vsyncpa %s821, 1

</llo_original>
